<compile_context>
chip_gen: v7x
topology: tpu7x:2x2x1
jax: 0.10.0
libtpu: 0.0.40
codegen_flags: <defaults>
</compile_context>

<pallas_src>
import jax
import jax.numpy as jnp
from jax.experimental import pallas as pl
from jax.experimental.pallas import tpu as pltpu


def _awl_kernel(p_ref, l_ref, out_ref):
    # p_ref: (1, num) f32 params in VMEM
    # l_ref: (1, num) f32 per-task losses in VMEM
    # out_ref: (1, 1) f32 in VMEM
    p = p_ref[...]
    l = l_ref[...]
    p2 = p * p
    # 0.5 / p^2 * loss  +  log(1 + p^2)
    term = 0.5 * l / p2 + jnp.log(1.0 + p2)
    out_ref[...] = jnp.sum(term, axis=-1, keepdims=True)


def _awl_forward_pallas(params, losses):
    num = params.shape[0]
    p2d = params.astype(jnp.float32).reshape(1, num)
    l2d = losses.astype(jnp.float32).reshape(1, num)

    out = pl.pallas_call(
        _awl_kernel,
        out_shape=jax.ShapeDtypeStruct((1, 1), jnp.float32),
        in_specs=[
            pl.BlockSpec(memory_space=pltpu.MemorySpace.VMEM),
            pl.BlockSpec(memory_space=pltpu.MemorySpace.VMEM),
        ],
        out_specs=pl.BlockSpec(memory_space=pltpu.MemorySpace.VMEM),
        cost_estimate=pl.CostEstimate(
            flops=6 * num,
            transcendentals=num,
            bytes_accessed=8 * num + 4,
        ),
    )(p2d, l2d)
    return out[0, 0]


@jax.custom_vjp
def automatic_weighted_loss(params, losses):
    """params: (num,) f32 parameters; losses: (num,) f32 per-task losses.

    Returns the scalar weighted loss (shape () f32), matching the PyTorch module.
    """
    return _awl_forward_pallas(params, losses)


def _awl_fwd(params, losses):
    out = _awl_forward_pallas(params, losses)
    return out, (params.astype(jnp.float32), losses.astype(jnp.float32))


def _awl_bwd(res, g):
    # Closed-form gradient (plain JAX; tiny, fuses into surrounding backward):
    #   dL/dl_i = 0.5 / p_i^2
    #   dL/dp_i = -loss_i / p_i^3 + 2 p_i / (1 + p_i^2)
    p, l = res
    p2 = p * p
    d_losses = g * (0.5 / p2)
    d_params = g * (-l / (p2 * p) + 2.0 * p / (1.0 + p2))
    return d_params, d_losses


automatic_weighted_loss.defvjp(_awl_fwd, _awl_bwd)


if __name__ == "__main__":
    num = 2  # default num=2 in the module

    # Deterministic parameter init per module __init__: torch.ones(num)
    params = jnp.ones((num,), dtype=jnp.float32)

    # Deterministic example per-task losses (scalars), like loss_list in forward()
    key = jax.random.PRNGKey(0)
    losses = jax.random.uniform(key, (num,), dtype=jnp.float32, minval=0.1, maxval=2.0)

    result = automatic_weighted_loss(params, losses)
    result = jax.block_until_ready(result)

    # Reference check in plain JAX (same math as the PyTorch forward)
    def ref_fn(p, l):
        p2 = p ** 2
        return jnp.sum(0.5 / p2 * l + jnp.log(1.0 + p2))

    ref = ref_fn(params, losses)
    assert jnp.allclose(result, ref, rtol=1e-5, atol=1e-6), (result, ref)

    # Gradient check (params are meant to be trained through this op)
    g_kernel = jax.grad(automatic_weighted_loss, argnums=0)(params, losses)
    g_ref = jax.grad(ref_fn, argnums=0)(params, losses)
    g_kernel = jax.block_until_ready(g_kernel)
    assert jnp.allclose(g_kernel, g_ref, rtol=1e-5, atol=1e-6), (g_kernel, g_ref)

    print("KERNEL_OK")
</pallas_src>

<mosaic_0001>
module attributes {stable_mosaic.version = 11 : i64} {
  func.func @_awl_kernel(%arg0: memref<1x2xf32, #tpu.memory_space<vmem>>, %arg1: memref<1x2xf32, #tpu.memory_space<vmem>>, %arg2: memref<1x1xf32, #tpu.memory_space<vmem>>) attributes {dimension_semantics = [], scalar_prefetch = 0 : i64, scratch_operands = 0 : i64, tpu.core_type = #tpu.core_type<tc>} {
    %c0 = arith.constant 0 : index
    %c0_0 = arith.constant 0 : index
    %0 = vector.load %arg0[%c0, %c0_0] : memref<1x2xf32, #tpu.memory_space<vmem>>, vector<1x2xf32>
    %c0_1 = arith.constant 0 : index
    %c0_2 = arith.constant 0 : index
    %1 = vector.load %arg1[%c0_1, %c0_2] : memref<1x2xf32, #tpu.memory_space<vmem>>, vector<1x2xf32>
    %2 = arith.mulf %0, %0 : vector<1x2xf32>
    %cst = arith.constant 5.000000e-01 : f32
    %3 = vector.broadcast %cst : f32 to vector<1x2xf32>
    %4 = arith.mulf %3, %1 : vector<1x2xf32>
    %5 = arith.divf %4, %2 : vector<1x2xf32>
    %cst_3 = arith.constant 1.000000e+00 : f32
    %6 = vector.broadcast %cst_3 : f32 to vector<1x2xf32>
    %7 = arith.addf %6, %2 : vector<1x2xf32>
    %8 = math.log %7 : vector<1x2xf32>
    %9 = arith.addf %5, %8 : vector<1x2xf32>
    %cst_4 = arith.constant dense<0.000000e+00> : vector<1xf32>
    %10 = vector.multi_reduction <add>, %9, %cst_4 [1] : vector<1x2xf32> to vector<1xf32>
    %11 = vector.shape_cast %10 : vector<1xf32> to vector<1x1xf32>
    %c0_5 = arith.constant 0 : index
    %c0_6 = arith.constant 0 : index
    %12 = vector.load %arg2[%c0_5, %c0_6] : memref<1x1xf32, #tpu.memory_space<vmem>>, vector<1x1xf32>
    tpu.vector_store %arg2[%c0_5, %c0_6], %11 {strides = array<i32>} : memref<1x1xf32, #tpu.memory_space<vmem>>, vector<1x1xf32>,
    return
  }
}

</mosaic_0001>

<llo_original>
// kernel: tpu_custom_call.1
$region0: #{tpu_custom_call.1}
  #allocation0 [shape = 'u32[]', space=smem, size = 0x4, offset = 0x4, fixed_abs, tag = 'smem constant byte address 0x4 - core index']
  #allocation1 [shape = 'u32[144,128]{1,0:T(1,128)}', space=vmem, size = 0x12000, scoped, tag = 'internal scratch']
  %s0 = inlined_call_operand.hbm [shape: f32[1,2], index: 0, kind: input, shape index: {}]
  %s1 = inlined_call_operand.vmem [shape: f32[1,2], index: 1, kind: input, shape index: {}]
  %s2 = inlined_call_operand.hbm [shape: f32[1,1], index: 2, kind: output, shape index: {}]
  %s3 = sld [smem:[#allocation0]]
  $region22: #{tpu_custom_call.1} parent=0
    _
  %s5 = ssub.s32 1, %s3
  %s6 = scalar_select 0, %s5, %s3
  $region1: #{tpu_custom_call.1} parent=0
    #allocation2 [shape = 'u8[512]{0}', space=vmem, size = 0x400, scoped, tag = 'input window, operand 0, single buffered']
    #allocation3 [shape = 's32[1]{0}', space=sflag, size = 0x4, scoped, tag = 'scoped memory for tpu_custom_call.1']
    #allocation4 [shape = 's32[1]{0}', space=sflag, size = 0x4, scoped, tag = 'scoped memory for tpu_custom_call.1']
    #allocation5 [shape = 'u8[512]{0}', space=vmem, size = 0x400, scoped, tag = 'output window, operand 0, single buffered']
    %7 = vsyncpa [#allocation3], 0
    %8 = vsyncpa [#allocation4], 0
    // Predicated region
    $region2: #{tpu_custom_call.1} parent=1 // pred_check
      _
    $region3: #{tpu_custom_call.1} parent=1 // pred_check_branch
      %10 = sbr.rel (0) target = $region5
    $region4: #{tpu_custom_call.1} parent=1 // pred_region
      %s12 = ssub.s32 16, 16
      %13 = vsyncadd [#allocation3], %s12
      %s15 = sshll.u32 [#allocation2], 4
      %s16 = int_to_ptr.vmem [resolvable:$true] %s15
      %18 = dma.hbm_to_vmem [thread:$0]  %s0, 16, %s16, [#allocation3]
    $region5: #{tpu_custom_call.1} parent=1 // pred_fallthru
      _
    // Predicated region
    $region6: #{tpu_custom_call.1} parent=1 // pred_check
      _
    $region7: #{tpu_custom_call.1} parent=1 // pred_check_branch
      %20 = sbr.rel (0) target = $region9
    $region8: #{tpu_custom_call.1} parent=1 // pred_region
      _
    $region9: #{tpu_custom_call.1} parent=1 // pred_fallthru
      _
    // Predicated region
    $region10: #{tpu_custom_call.1} parent=1 // pred_check
      _
    $region11: #{tpu_custom_call.1} parent=1 // pred_check_branch
      %22 = sbr.rel (0) target = $region13
    $region12: #{tpu_custom_call.1} parent=1 // pred_region
      %23 = dma.done [#allocation3], 16
    $region13: #{tpu_custom_call.1} parent=1 // pred_fallthru
      _
    %v24 = vld [vmem:[#allocation2] sm:$0x1]
    %v25 = vld [vmem:[%s1] sm:$0x1]
    %v26 = vmul.f32 %v24, %v24
    %v27 = vmul.f32 %v25, 0.5
    %v28 = vrcp.pop %v26
    %v29 = vmul.f32 %v27, %v28
    %v30 = vadd.f32 %v26, 1.0
    %v31 = vlog2.pop %v30
    %v32 = vmul.f32 %v31, 0.6931472
    %v33 = vadd.f32 %v29, %v32
    %vm34 = vcmask 8192
    %v35 = vsel %vm34, %v33, 0.0
    %36 = vadd.xlane.f32.xlu0 %v35
    %v37 = vpop.xlane.xlu0 %36
    %vm38 = vcmask 0
    %39 = vst.msk [vmem:[#allocation5] sm:$0x1] %vm38, %v37
    // Predicated region
    $region14: #{tpu_custom_call.1} parent=1 // pred_check
      _
    $region15: #{tpu_custom_call.1} parent=1 // pred_check_branch
      %41 = sbr.rel (0) target = $region17
    $region16: #{tpu_custom_call.1} parent=1 // pred_region
      %s43 = ssub.s32 16, 16
      %44 = vsyncadd [#allocation4], %s43
      %s46 = sshll.u32 [#allocation5], 4
      %s47 = int_to_ptr.vmem [resolvable:$true] %s46
      %49 = dma.vmem_to_hbm [thread:$0]  %s47, 16, %s2, [#allocation4]
    $region17: #{tpu_custom_call.1} parent=1 // pred_fallthru
      _
    // Predicated region
    $region18: #{tpu_custom_call.1} parent=1 // pred_check
      _
    $region19: #{tpu_custom_call.1} parent=1 // pred_check_branch
      %51 = sbr.rel (0) target = $region21
    $region20: #{tpu_custom_call.1} parent=1 // pred_region
      %52 = dma.done [#allocation4], 16
    $region21: #{tpu_custom_call.1} parent=1 // pred_fallthru
      _
    %53 = vsyncpa [#allocation3], 1
    %54 = vsyncpa [#allocation4], 1

</llo_original>
